<compile_context>
chip_gen: v7x
topology: tpu7x:2x2x1
jax: 0.10.0
libtpu: 0.0.40
codegen_flags: <defaults>
</compile_context>

<pallas_src>
import functools

import jax
import jax.numpy as jnp
from jax.experimental import pallas as pl
from jax.experimental.pallas import tpu as pltpu


_VMEM_BUDGET = 40 << 20   # conservative working-set budget (fits v7x's 64 MiB VMEM)
_TM = 256                 # Gram-row tile for the 2-TensorCore (v7x) path


def _round_up(x: int, m: int) -> int:
    return (x + m - 1) // m * m


def _pick_tk(k_pad: int, tk_cap: int) -> int:
    """Largest multiple of 128 that divides k_pad and is <= tk_cap (>= 128)."""
    tk_cap = max(128, min(tk_cap, k_pad))
    best, t = 128, 128
    while t <= tk_cap:
        if k_pad % t == 0:
            best = t
        t += 128
    return best


# ----------------------------- kernels ------------------------------------ #

def _make_loss_kernel(inv_denom: float, inv_num_gram: float):
    """Single row-block: grid = (num_k,).  Accumulate F @ F^T, finalize to a scalar."""

    def kernel(feat_ref, target_ref, loss_ref, acc_ref):
        k = pl.program_id(0)

        @pl.when(k == 0)
        def _():
            acc_ref[...] = jnp.zeros_like(acc_ref)

        f = feat_ref[...]                                    # native dtype (bf16/f32)
        acc_ref[...] += jax.lax.dot_general(
            f, f,
            dimension_numbers=(((1,), (1,)), ((), ())),      # F_tile @ F_tile^T
            preferred_element_type=jnp.float32,
        )
        # TODO(synk): check the bundle dump that this contraction does not emit a
        # per-step vxpose once compute-bound (large M, f32, v5e).

        @pl.when(k == pl.num_programs(0) - 1)
        def _():
            g = acc_ref[...] * inv_denom
            diff = g - target_ref[...].astype(jnp.float32)
            loss_ref[0, 0] = jnp.sum(diff * diff) * inv_num_gram

    return kernel


def _make_loss_kernel_mtiled(inv_denom: float, inv_num_gram: float):
    """Row-tiled Gram: grid = (num_m, num_k).  Each m-tile emits a partial loss."""

    def kernel(feat_rows_ref, feat_all_ref, target_ref, loss_ref, acc_ref):
        k = pl.program_id(1)

        @pl.when(k == 0)
        def _():
            acc_ref[...] = jnp.zeros_like(acc_ref)

        acc_ref[...] += jax.lax.dot_general(
            feat_rows_ref[...], feat_all_ref[...],
            dimension_numbers=(((1,), (1,)), ((), ())),      # F_rows @ F^T
            preferred_element_type=jnp.float32,
        )

        @pl.when(k == pl.num_programs(1) - 1)
        def _():
            g = acc_ref[...] * inv_denom
            diff = g - target_ref[...].astype(jnp.float32)
            partial = jnp.sum(diff * diff) * inv_num_gram
            # lane-dense (8,128) block; the scalar is broadcast, JAX reads [:,0,0].
            loss_ref[...] = partial * jnp.ones(loss_ref.shape, jnp.float32)

    return kernel


# ----------------------------- wrapper ------------------------------------ #

def _style_loss_xla(x, target_gram):
    a, b, c, d = x.shape
    f = x.reshape(a * b, c * d).astype(jnp.float32)
    g = (f @ f.T) / (a * b * c * d)
    return x, jnp.mean((g - target_gram.astype(jnp.float32)) ** 2)


def style_loss_forward(x, target_gram, *, tk_max: int = 4096, tm: int = _TM,
                       use_pallas=None):
    """Mirrors StyleLoss.forward: returns (x, loss) with loss = mse(gram(x), target)."""
    a, b, c, d = x.shape
    M, K = a * b, c * d

    if use_pallas is None:
        use_pallas = M * K >= (1 << 15)       # tiny problems: fused XLA is faster
    if not use_pallas:
        return _style_loss_xla(x, target_gram)

    fi = jnp.dtype(x.dtype).itemsize          # features streamed in native dtype
    ti = jnp.dtype(target_gram.dtype).itemsize

    K_pad = _round_up(K, 128)                 # pad only to the next 128 (<=127 cols)
    features = x.reshape(M, K)
    if K_pad != K:
        features = jnp.pad(features, ((0, 0), (0, K_pad - K)))   # zeros add 0 to F@F^T

    inv_denom = 1.0 / float(a * b * c * d)
    inv_num_gram = 1.0 / float(M * M)

    tiled_m = (M >= 2 * tm) and (M % tm == 0)   # keep both v7x TensorCores busy

    if not tiled_m:
        # ------------------ single row-block, grid = (num_k,) ------------------ #
        fixed = 2 * M * M * ti + M * M * 4       # target (2 bufs) + f32 accumulator
        tk_cap = ((_VMEM_BUDGET - fixed) // (2 * M * fi)) if _VMEM_BUDGET > fixed else 128
        tk = _pick_tk(K_pad, min(tk_max, int(tk_cap)))
        num_k = K_pad // tk
        footprint = 2 * M * tk * fi + fixed
        vmem_limit = int(min(48 << 20, max(footprint + (4 << 20), 8 << 20)))

        loss = pl.pallas_call(
            _make_loss_kernel(inv_denom, inv_num_gram),
            out_shape=jax.ShapeDtypeStruct((1, 1), jnp.float32),
            grid_spec=pltpu.PrefetchScalarGridSpec(
                num_scalar_prefetch=0,
                grid=(num_k,),
                in_specs=[
                    # features: stream (M, tk) tiles along K (pipelined HBM read)
                    pl.BlockSpec((M, tk), lambda k: (0, k)),
                    # target gram: resident across the whole reduction
                    pl.BlockSpec((M, M), lambda k: (0, 0)),
                ],
                out_specs=pl.BlockSpec((1, 1), lambda k: (0, 0),
                                       memory_space=pltpu.MemorySpace.SMEM),
                scratch_shapes=[pltpu.VMEM((M, M), jnp.float32)],
            ),
            compiler_params=pltpu.CompilerParams(
                dimension_semantics=("arbitrary",),          # K is a reduction
                vmem_limit_bytes=vmem_limit,
            ),
            cost_estimate=pl.CostEstimate(
                flops=2 * M * M * K_pad,
                transcendentals=0,
                bytes_accessed=M * K_pad * fi + M * M * ti + 4,
            ),
        )(features, target_gram)
        return x, loss[0, 0]

    # ------------- row-tiled Gram, grid = (num_m, num_k), v7x 2-TC ------------- #
    num_m = M // tm
    fixed = 2 * tm * M * ti + tm * M * 4
    tk_cap = ((_VMEM_BUDGET - fixed) // (2 * (tm + M) * fi)) if _VMEM_BUDGET > fixed else 128
    tk = _pick_tk(K_pad, min(tk_max, int(tk_cap)))
    num_k = K_pad // tk
    footprint = 2 * (tm + M) * tk * fi + fixed
    vmem_limit = int(min(48 << 20, max(footprint + (4 << 20), 8 << 20)))

    partials = pl.pallas_call(
        _make_loss_kernel_mtiled(inv_denom, inv_num_gram),
        out_shape=jax.ShapeDtypeStruct((num_m, 8, 128), jnp.float32),
        grid_spec=pltpu.PrefetchScalarGridSpec(
            num_scalar_prefetch=0,
            grid=(num_m, num_k),
            in_specs=[
                pl.BlockSpec((tm, tk), lambda m, k: (m, k)),   # this m-tile's rows of F
                pl.BlockSpec((M, tk), lambda m, k: (0, k)),    # all of F (for F^T)
                pl.BlockSpec((tm, M), lambda m, k: (m, 0)),    # target rows
            ],
            out_specs=pl.BlockSpec((1, 8, 128), lambda m, k: (m, 0, 0)),
            scratch_shapes=[pltpu.VMEM((tm, M), jnp.float32)],
        ),
        compiler_params=pltpu.CompilerParams(
            dimension_semantics=("parallel", "arbitrary"),
            vmem_limit_bytes=vmem_limit,
        ),
        cost_estimate=pl.CostEstimate(
            flops=2 * M * M * K_pad,
            transcendentals=0,
            bytes_accessed=(num_m + 1) * M * K_pad * fi + M * M * ti
                           + num_m * 8 * 128 * 4,
        ),
    )(features, features, target_gram)
    return x, jnp.sum(partials[:, 0, 0])


# ----------------------------- reference & test ---------------------------- #

def gram_matrix_ref(x):
    """Pure-JAX reference of the PyTorch gram_matrix (full-precision matmul)."""
    a, b, c, d = x.shape
    f = x.reshape(a * b, c * d).astype(jnp.float32)
    g = jnp.matmul(f, f.T, precision=jax.lax.Precision.HIGHEST)
    return g / (a * b * c * d)


if __name__ == "__main__":
    key = jax.random.PRNGKey(0)
    k1, k2, k3, k4, k5, k6 = jax.random.split(key, 6)

    fwd = jax.jit(functools.partial(style_loss_forward, use_pallas=True))

    # 1) Canonical small NCHW feature map (batch=2, channels=4, 16x16), f32.
    x = jax.random.normal(k1, (2, 4, 16, 16), jnp.float32)
    target = gram_matrix_ref(jax.random.normal(k2, (2, 4, 16, 16), jnp.float32))
    x_out, loss = fwd(x, target)
    jax.block_until_ready((x_out, loss))
    loss_ref = jnp.mean((gram_matrix_ref(x) - target) ** 2)
    assert jnp.allclose(x_out, x)
    assert jnp.allclose(loss, loss_ref, rtol=2e-2, atol=1e-9), (loss, loss_ref)

    # Auto heuristic short-circuits tiny problems to fused XLA; same answer.
    _, loss_auto = jax.jit(style_loss_forward)(x, target)
    jax.block_until_ready(loss_auto)
    assert jnp.allclose(loss_auto, loss_ref, rtol=2e-2, atol=1e-9)

    # 2) K = c*d not a multiple of 128 (exercises the 128-pad path), bf16 stream.
    xb = jax.random.normal(k3, (2, 4, 10, 10), jnp.bfloat16)
    tb = gram_matrix_ref(jax.random.normal(k4, (2, 4, 10, 10), jnp.float32))
    _, loss_b = fwd(xb, tb)
    jax.block_until_ready(loss_b)
    loss_b_ref = jnp.mean((gram_matrix_ref(xb) - tb) ** 2)
    assert jnp.allclose(loss_b, loss_b_ref, rtol=2e-2, atol=1e-6), (loss_b, loss_b_ref)

    # 3) Larger M = a*b = 512 exercises the parallel Gram-row tiling (v7x path).
    xl = jax.random.normal(k5, (4, 128, 16, 16), jnp.float32)
    tl = gram_matrix_ref(jax.random.normal(k6, (4, 128, 16, 16), jnp.float32))
    _, loss_l = fwd(xl, tl)
    jax.block_until_ready(loss_l)
    loss_l_ref = jnp.mean((gram_matrix_ref(xl) - tl) ** 2)
    assert jnp.allclose(loss_l, loss_l_ref, rtol=2e-2, atol=1e-9), (loss_l, loss_l_ref)

    print("KERNEL_OK")
</pallas_src>

<mosaic_0001>
module attributes {stable_mosaic.version = 11 : i64} {
  func.func @kernel(%arg0: i32, %arg1: memref<8x256xf32, #tpu.memory_space<vmem>>, %arg2: memref<8x8xf32, #tpu.memory_space<vmem>>, %arg3: memref<1x1xf32, #tpu.memory_space<smem>>, %arg4: memref<8x8xf32, #tpu.memory_space<vmem>>) attributes {dimension_semantics = [#tpu.dimension_semantics<arbitrary>], iteration_bounds = array<i64: 1>, scalar_prefetch = 0 : i64, scratch_operands = 1 : i64, tpu.core_type = #tpu.core_type<tc>, window_params = [{transform_indices = @transform_0, window_bounds = array<i64: 8, 256>}, {pipeline_mode = #tpu.pipeline_mode<synchronous>, transform_indices = @transform_1, window_bounds = array<i64: 8, 8>}, {transform_indices = @transform_2, window_bounds = array<i64: 1, 1>}]} {
    %c0_i32 = arith.constant 0 : i32
    %0 = arith.cmpi eq, %arg0, %c0_i32 : i32
    %1 = arith.extui %0 : i1 to i32
    %c0_i32_0 = arith.constant 0 : i32
    %2 = arith.cmpi ne, %1, %c0_i32_0 : i32
    scf.if %2 {
      %cst_8 = arith.constant 0.000000e+00 : f32
      %11 = vector.broadcast %cst_8 : f32 to vector<8x8xf32>
      %c0_9 = arith.constant 0 : index
      %c0_10 = arith.constant 0 : index
      %12 = vector.load %arg4[%c0_9, %c0_10] : memref<8x8xf32, #tpu.memory_space<vmem>>, vector<8x8xf32>
      tpu.vector_store %arg4[%c0_9, %c0_10], %11 {strides = array<i32>} : memref<8x8xf32, #tpu.memory_space<vmem>>, vector<8x8xf32>,
    } else {
    }
    %c0 = arith.constant 0 : index
    %c0_1 = arith.constant 0 : index
    %3 = vector.load %arg1[%c0, %c0_1] : memref<8x256xf32, #tpu.memory_space<vmem>>, vector<8x256xf32>
    %c0_2 = arith.constant 0 : index
    %c0_3 = arith.constant 0 : index
    %4 = vector.load %arg4[%c0_2, %c0_3] : memref<8x8xf32, #tpu.memory_space<vmem>>, vector<8x8xf32>
    %cst = arith.constant dense<0.000000e+00> : vector<8x8xf32>
    %5 = tpu.matmul %3, %3, %cst {dimension_numbers = #tpu.dot_dimension_numbers<[1], [1], [0], [0], [0, 0, 1, 0], [], []>} : vector<8x256xf32>, vector<8x256xf32>, vector<8x8xf32> -> vector<8x8xf32>
    %6 = arith.addf %4, %5 : vector<8x8xf32>
    %c0_4 = arith.constant 0 : index
    %c0_5 = arith.constant 0 : index
    %7 = vector.load %arg4[%c0_4, %c0_5] : memref<8x8xf32, #tpu.memory_space<vmem>>, vector<8x8xf32>
    tpu.vector_store %arg4[%c0_4, %c0_5], %6 {strides = array<i32>} : memref<8x8xf32, #tpu.memory_space<vmem>>, vector<8x8xf32>,
    %c0_i32_6 = arith.constant 0 : i32
    %8 = arith.cmpi eq, %arg0, %c0_i32_6 : i32
    %9 = arith.extui %8 : i1 to i32
    %c0_i32_7 = arith.constant 0 : i32
    %10 = arith.cmpi ne, %9, %c0_i32_7 : i32
    scf.if %10 {
      %c0_8 = arith.constant 0 : index
      %c0_9 = arith.constant 0 : index
      %11 = vector.load %arg4[%c0_8, %c0_9] : memref<8x8xf32, #tpu.memory_space<vmem>>, vector<8x8xf32>
      %cst_10 = arith.constant 4.8828125E-4 : f32
      %12 = vector.broadcast %cst_10 : f32 to vector<8x8xf32>
      %13 = arith.mulf %11, %12 : vector<8x8xf32>
      %c0_11 = arith.constant 0 : index
      %c0_12 = arith.constant 0 : index
      %14 = vector.load %arg2[%c0_11, %c0_12] : memref<8x8xf32, #tpu.memory_space<vmem>>, vector<8x8xf32>
      %15 = arith.subf %13, %14 : vector<8x8xf32>
      %16 = arith.mulf %15, %15 : vector<8x8xf32>
      %17 = vector.shape_cast %16 : vector<8x8xf32> to vector<1x8x8xf32>
      %cst_13 = arith.constant dense<0.000000e+00> : vector<1xf32>
      %18 = vector.multi_reduction <add>, %17, %cst_13 [1, 2] : vector<1x8x8xf32> to vector<1xf32>
      %19 = vector.shape_cast %18 : vector<1xf32> to vector<1x1x1xf32>
      %20 = vector.extract %19[0, 0, 0] : f32 from vector<1x1x1xf32>
      %cst_14 = arith.constant 1.562500e-02 : f32
      %21 = arith.mulf %20, %cst_14 : f32
      %c0_15 = arith.constant 0 : index
      %c0_16 = arith.constant 0 : index
      %22 = memref.load %arg3[%c0_15, %c0_16] : memref<1x1xf32, #tpu.memory_space<smem>>
      memref.store %21, %arg3[%c0_15, %c0_16] : memref<1x1xf32, #tpu.memory_space<smem>>
    } else {
    }
    return
  }
  func.func @transform_0(%arg0: i32) -> (i32, i32) {
    %c0_i32 = arith.constant 0 : i32
    %c0_i32_0 = arith.constant 0 : i32
    return %c0_i32, %arg0 : i32, i32
  }
  func.func @transform_1(%arg0: i32) -> (i32, i32) {
    %c0_i32 = arith.constant 0 : i32
    %c0_i32_0 = arith.constant 0 : i32
    %c0_i32_1 = arith.constant 0 : i32
    return %c0_i32, %c0_i32_0 : i32, i32
  }
  func.func @transform_2(%arg0: i32) -> (i32, i32) {
    %c0_i32 = arith.constant 0 : i32
    %c0_i32_0 = arith.constant 0 : i32
    %c0_i32_1 = arith.constant 0 : i32
    return %c0_i32, %c0_i32_0 : i32, i32
  }
}

</mosaic_0001>

<llo_original>
// kernel: style_loss_forward.1
$region0: #{style_loss_forward.1}
  #allocation0 [shape = 'u32[]', space=smem, size = 0x4, offset = 0x4, fixed_abs, tag = 'smem constant byte address 0x4 - core index']
  #allocation1 [shape = 'u32[144,128]{1,0:T(1,128)}', space=vmem, size = 0x12000, scoped, tag = 'internal scratch']
  #allocation2 [shape = 'f32[8,8]{1,0:T(8,128)}', space=vmem, size = 0x1000, scoped, tag = 'scratch operand']
  %s0 = inlined_call_operand.vmem [shape: f32[8,256], index: 0, kind: input, shape index: {}]
  %s1 = inlined_call_operand.vmem [shape: f32[8,8], index: 1, kind: input, shape index: {}]
  %s2 = inlined_call_operand.hbm [shape: f32[1,1], index: 2, kind: output, shape index: {}]
  %s3 = sld [smem:[#allocation0]]
  $region26: #{style_loss_forward.1} parent=0
    _
  %s5 = ssub.s32 1, %s3
  %s6 = scalar_select 0, %s5, %s3
  $region1: #{style_loss_forward.1} parent=0
    #allocation3 [shape = 'u8[512]{0}', space=smem, size = 0x200, scoped, tag = 'output window, operand 0, single buffered']
    #allocation4 [shape = 's32[1]{0}', space=sflag, size = 0x4, scoped, tag = 'scoped memory for style_loss_forward.1']
    %7 = vsyncpa [#allocation4], 0
    // Predicated region
    $region2: #{style_loss_forward.1} parent=1 // pred_check
      _
    $region3: #{style_loss_forward.1} parent=1 // pred_check_branch
      %9 = sbr.rel (0) target = $region5
    $region4: #{style_loss_forward.1} parent=1 // pred_region
      _
    $region5: #{style_loss_forward.1} parent=1 // pred_fallthru
      _
    // Predicated region
    $region6: #{style_loss_forward.1} parent=1 // pred_check
      _
    $region7: #{style_loss_forward.1} parent=1 // pred_check_branch
      %11 = sbr.rel (0) target = $region9
    $region8: #{style_loss_forward.1} parent=1 // pred_region
      _
    $region9: #{style_loss_forward.1} parent=1 // pred_fallthru
      _
    %p12 = scmp.eq.s32.totalorder 0, 0
    // Predicated region
    $region10: #{style_loss_forward.1} parent=1 // pred_check
      %p13 = pneg %p12
    $region11: #{style_loss_forward.1} parent=1 // pred_check_branch
      %15 = sbr.rel (%p13) target = $region13
    $region12: #{style_loss_forward.1} parent=1 // pred_region
      %vm16 = vcmask 64512
      %17 = vst.msk [vmem:[#allocation2] sm:$0xff] %vm16, 0.0
    $region13: #{style_loss_forward.1} parent=1 // pred_fallthru
      _
    %v18 = vld [vmem:[%s0] sm:$0xff]
    %v19 = vld [vmem:[%s0 + $0x8] sm:$0xff]
    %v20 = vld [vmem:[#allocation2] sm:$0xff]
    %21 = vmatprep.subr.mxu0 %v19
    %22 = vmatpush1.xpose.msra.mxu0 %v18
    %23 = vmatprep.subr.mxu0 0.0
    %24 = vmatpush1.xpose.msra.mxu0 0.0
    %25 = vmatprep.subr.mxu0 0.0
    %26 = vmatpush1.xpose.msra.mxu0 0.0
    %27 = vmatprep.subr.mxu0 0.0
    %28 = vmatpush1.xpose.msra.mxu0 0.0
    %29 = vmatprep.subr.mxu0 0.0
    %30 = vmatpush1.xpose.msra.mxu0 0.0
    %31 = vmatprep.subr.mxu0 0.0
    %32 = vmatpush1.xpose.msra.mxu0 0.0
    %33 = vmatprep.subr.mxu0 0.0
    %34 = vmatpush1.xpose.msra.mxu0 0.0
    %35 = vmatprep.subr.mxu0 0.0
    %36 = vmatpush1.xpose.msra.mxu0 0.0
    %37 = vmatprep.subr.mxu0 0.0
    %38 = vmatpush1.xpose.msra.mxu0 0.0
    %39 = vmatprep.subr.mxu0 0.0
    %40 = vmatpush1.xpose.msra.mxu0 0.0
    %41 = vmatprep.subr.mxu0 0.0
    %42 = vmatpush1.xpose.msra.mxu0 0.0
    %43 = vmatprep.subr.mxu0 0.0
    %44 = vmatpush1.xpose.msra.mxu0 0.0
    %45 = vmatprep.subr.mxu0 0.0
    %46 = vmatpush1.xpose.msra.mxu0 0.0
    %47 = vmatprep.subr.mxu0 0.0
    %48 = vmatpush1.xpose.msra.mxu0 0.0
    %49 = vmatprep.subr.mxu0 0.0
    %50 = vmatpush1.xpose.msra.mxu0 0.0
    %51 = vmatprep.subr.mxu0 0.0
    %52 = vmatpush1.xpose.msra.mxu0 0.0
    %53 = vmatprep.subr.mxu0 0.0
    %54 = vmatpush1.xpose.msra.mxu0 0.0
    %55 = vmatprep.subr.mxu0 0.0
    %56 = vmatpush1.xpose.msra.mxu0 0.0
    %57 = vmatprep.subr.mxu0 0.0
    %58 = vmatpush1.xpose.msra.mxu0 0.0
    %59 = vmatprep.subr.mxu0 0.0
    %60 = vmatpush1.xpose.msra.mxu0 0.0
    %61 = vmatprep.subr.mxu0 0.0
    %62 = vmatpush1.xpose.msra.mxu0 0.0
    %63 = vmatprep.subr.mxu0 0.0
    %64 = vmatpush1.xpose.msra.mxu0 0.0
    %65 = vmatprep.subr.mxu0 0.0
    %66 = vmatpush1.xpose.msra.mxu0 0.0
    %67 = vmatprep.subr.mxu0 0.0
    %68 = vmatpush1.xpose.msra.mxu0 0.0
    %69 = vmatprep.subr.mxu0 0.0
    %70 = vmatpush1.xpose.msra.mxu0 0.0
    %71 = vmatprep.subr.mxu0 0.0
    %72 = vmatpush1.xpose.msra.mxu0 0.0
    %73 = vmatprep.subr.mxu0 0.0
    %74 = vmatpush1.xpose.msra.mxu0 0.0
    %75 = vmatprep.subr.mxu0 0.0
    %76 = vmatpush1.xpose.msra.mxu0 0.0
    %77 = vmatprep.subr.mxu0 0.0
    %78 = vmatpush1.xpose.msra.mxu0 0.0
    %79 = vmatprep.subr.mxu0 0.0
    %80 = vmatpush1.xpose.msra.mxu0 0.0
    %81 = vmatprep.subr.mxu0 0.0
    %82 = vmatpush1.xpose.msra.mxu0 0.0
    %83 = vmatprep.subr.mxu0 0.0
    %84 = vmatpush1.xpose.msra.mxu0 0.0
    %85 = vmatprep.mubr.f32.mxu0 %v19
    %86 = vmatmul.mubr.f32.gmra.mrb[0].mxu0 %v18
    %v87 = vpop.f32.mrb[0].mxu0
    %v88 = vadd.f32 0.0, %v87
    %v89 = vpop.f32.mrb[0].mxu0
    %90 = vdwg.mxu0
    %v91 = vadd.f32 %v20, %v88
    %vm92 = vcmask 64512
    %93 = vst.msk [vmem:[#allocation2] sm:$0xff] %vm92, %v91
    // Predicated region
    $region14: #{style_loss_forward.1} parent=1 // pred_check
      %p94 = pneg %p12
    $region15: #{style_loss_forward.1} parent=1 // pred_check_branch
      %96 = sbr.rel (%p94) target = $region17
    $region16: #{style_loss_forward.1} parent=1 // pred_region
      %v97 = vld [vmem:[#allocation2] sm:$0xff]
      %v98 = vmul.f32 %v97, 0.00048828125
      %v99 = vld [vmem:[%s1] sm:$0xff]
      %v100 = vsub.f32 %v98, %v99
      %v101 = vmul.f32 %v100, %v100
      %v102 = vsel %vm92, %v101, 0.0
      %103 = vadd.xlane.f32.xlu0 %v102
      %v104 = vpop.xlane.xlu0 %103
      %v105 = vrot.slane %v104, 4
      %v106 = vadd.f32 %v104, %v105
      %v107 = vrot.slane %v106, 2
      %v108 = vadd.f32 %v106, %v107
      %v109 = vrot.slane %v108, 1
      %v110 = vadd.f32 %v108, %v109
      %s111 = vtos %v110
      %s112 = smul.f32 %s111, 0.015625
      %s113 = scalar_lea.smem [#allocation3], 0
      %114 = sst [smem:[%s113]] %s112
    $region17: #{style_loss_forward.1} parent=1 // pred_fallthru
      _
    // Predicated region
    $region18: #{style_loss_forward.1} parent=1 // pred_check
      _
    $region19: #{style_loss_forward.1} parent=1 // pred_check_branch
      %116 = sbr.rel (0) target = $region21
    $region20: #{style_loss_forward.1} parent=1 // pred_region
      %s118 = ssub.s32 16, 16
      %119 = vsyncadd [#allocation4], %s118
      %122 = dma.smem_to_hbm [#allocation3], 16, %s2, [#allocation4]
    $region21: #{style_loss_forward.1} parent=1 // pred_fallthru
      _
    // Predicated region
    $region22: #{style_loss_forward.1} parent=1 // pred_check
      _
    $region23: #{style_loss_forward.1} parent=1 // pred_check_branch
      %124 = sbr.rel (0) target = $region25
    $region24: #{style_loss_forward.1} parent=1 // pred_region
      %125 = dma.done [#allocation4], 16
    $region25: #{style_loss_forward.1} parent=1 // pred_fallthru
      _
    %126 = sfence
    %127 = vsyncpa [#allocation4], 1

</llo_original>
